<compile_context>
chip_gen: v7x
topology: tpu7x:2x2x1
jax: 0.10.0
libtpu: 0.0.40
codegen_flags: <defaults>
</compile_context>

<pallas_src>
import math
import functools

import jax
import jax.numpy as jnp
from jax import lax
from jax.experimental import pallas as pl
from jax.experimental.pallas import tpu as pltpu


def _round_up(x: int, m: int) -> int:
    return (x + m - 1) // m * m


def _fused_mlp_kernel(*refs, n_hidden: int, head_vector: bool, compute_dtype):
    """refs = (x_ref, w0, b0, ..., w_{n-1}, b_{n-1}, w_head, b_head, o_ref)."""
    x_ref = refs[0]
    o_ref = refs[-1]
    params = refs[1:-1]

    h = x_ref[...].astype(jnp.float32)

    # Hidden layers: fused MXU matmul + bias + ReLU; activations stay on-chip.
    for li in range(n_hidden):
        w = params[2 * li][...]
        b = params[2 * li + 1][...]                       # (1, d_out) -> broadcasts over rows
        y = jnp.dot(h.astype(compute_dtype), w.astype(compute_dtype),
                    preferred_element_type=jnp.float32)
        h = jnp.maximum(y + b, 0.0)

    w_h = params[2 * n_hidden][...]
    b_h = params[2 * n_hidden + 1][...]
    if head_vector:
        # d_out == 1 head: contract the feature axis of h (TB, D) with the weight row
        # (1, D) -> (1, TB).  Same contraction pattern as q @ k.T; the result puts the
        # batch on lanes, so the store is an unmasked, lane-dense vst and the
        # squeeze(-1) is free.
        row = lax.dot_general(
            w_h.astype(compute_dtype), h.astype(compute_dtype),
            dimension_numbers=(((1,), (1,)), ((), ())),
            preferred_element_type=jnp.float32)           # (1, TB)
        o_ref[...] = (row + b_h).astype(o_ref.dtype)
    else:
        y = jnp.dot(h.astype(compute_dtype), w_h.astype(compute_dtype),
                    preferred_element_type=jnp.float32) + b_h
        o_ref[...] = y.astype(o_ref.dtype)


def mlp_pallas(x: jax.Array, params, *, compute_dtype=jnp.float32,
               batch_tile: int = 512) -> jax.Array:
    """Fused MLP forward.  x: [B, d_in]; params: list of (W [d_in, d_out], b [1, d_out])."""
    B, d_in = x.shape
    n_layers = len(params)
    assert n_layers >= 1
    n_hidden = n_layers - 1
    d_out = params[-1][0].shape[1]
    head_vector = (d_out == 1)

    # Batch tiling: multiple of 8 sublanes (f32); 512-row cap keeps the per-step
    # working set (x tile + out tile, double-buffered, + ~17 KiB of weights) well under
    # the 32 MiB default scoped-VMEM limit on every generation (v7x included).
    tb = _round_up(min(batch_tile, _round_up(B, 8)), 8)
    b_pad = _round_up(B, tb)
    grid = (b_pad // tb,)

    if b_pad != B:
        x = jnp.pad(x, ((0, b_pad - B), (0, 0)))

    const = lambda i: (0, 0)        # weights/biases: whole array, resident across steps
    in_specs = [pl.BlockSpec((tb, d_in), lambda i: (i, 0))]
    args = [x]
    for li in range(n_hidden):
        w, b = params[li]
        in_specs += [pl.BlockSpec(w.shape, const), pl.BlockSpec(b.shape, const)]
        args += [w, b]

    w_h, b_h = params[-1]
    if head_vector:
        d_last = w_h.shape[0]
        w_h = w_h.reshape(1, d_last)                      # column -> row (metadata-only)
        b_h = b_h.reshape(1, 1)
        out_shape = jax.ShapeDtypeStruct((1, b_pad), x.dtype)   # batch on lanes
        out_spec = pl.BlockSpec((1, tb), lambda i: (0, i))
    else:
        out_shape = jax.ShapeDtypeStruct((b_pad, d_out), x.dtype)
        out_spec = pl.BlockSpec((tb, d_out), lambda i: (i, 0))
    in_specs += [pl.BlockSpec(w_h.shape, const), pl.BlockSpec(b_h.shape, const)]
    args += [w_h, b_h]

    kernel = functools.partial(_fused_mlp_kernel, n_hidden=n_hidden,
                               head_vector=head_vector, compute_dtype=compute_dtype)
    out = pl.pallas_call(
        kernel,
        out_shape=out_shape,
        grid=grid,
        in_specs=in_specs,
        out_specs=out_spec,
        compiler_params=pltpu.CompilerParams(
            # Batch tiles are independent -> sharded across both TensorCores on v7x.
            dimension_semantics=("parallel",),
        ),
    )(*args)

    if head_vector:
        return out[0, :B]            # fused squeeze(-1)
    return out[:B]


def init_mlp_params(key, d_in, d_layers, d_out, dtype=jnp.float32):
    """kaiming_normal_(fan_in) weights + uniform(-1/sqrt(fan_in)) biases.

    Weights are stored as [fan_in, fan_out] (transposed vs. torch's [out, in]);
    biases are stored as (1, fan_out) so no per-call reshape is needed."""
    dims = [d_in] + list(d_layers) + [d_out]
    params = []
    for i in range(len(dims) - 1):
        fan_in, fan_out = dims[i], dims[i + 1]
        key, kw, kb = jax.random.split(key, 3)
        std = math.sqrt(2.0 / fan_in)       # kaiming_normal_, mode='fan_in', gain=sqrt(2)
        w = std * jax.random.normal(kw, (fan_in, fan_out), dtype=dtype)
        bound = 1.0 / math.sqrt(fan_in)
        b = jax.random.uniform(kb, (1, fan_out), dtype=dtype, minval=-bound, maxval=bound)
        params.append((w, b))
    return params


if __name__ == "__main__":
    # Small shapes consistent with the module: d_in=32, two hidden layers, d_out=1.
    B, d_in, d_layers, d_out = 8, 32, [64, 32], 1

    key = jax.random.PRNGKey(0)
    kx, kp = jax.random.split(key)
    x = jax.random.normal(kx, (B, d_in), dtype=jnp.float32)
    params = init_mlp_params(kp, d_in, d_layers, d_out)

    out = mlp_pallas(x, params)
    out = jax.block_until_ready(out)

    # Pure-JAX reference check (matches MLP.forward semantics).
    ref = x
    for i, (w, b) in enumerate(params):
        ref = ref @ w + b
        if i != len(params) - 1:
            ref = jnp.maximum(ref, 0.0)
    ref = jnp.squeeze(ref, axis=-1)
    assert out.shape == (B,), out.shape
    assert jnp.allclose(out, ref, atol=1e-5, rtol=1e-5), float(jnp.max(jnp.abs(out - ref)))

    print("KERNEL_OK")
</pallas_src>

<mosaic_0001>
module attributes {stable_mosaic.version = 11 : i64} {
  func.func @_fused_mlp_kernel(%arg0: i32, %arg1: memref<8x32xf32, #tpu.memory_space<vmem>>, %arg2: memref<32x64xf32, #tpu.memory_space<vmem>>, %arg3: memref<1x64xf32, #tpu.memory_space<vmem>>, %arg4: memref<64x32xf32, #tpu.memory_space<vmem>>, %arg5: memref<1x32xf32, #tpu.memory_space<vmem>>, %arg6: memref<1x32xf32, #tpu.memory_space<vmem>>, %arg7: memref<1x1xf32, #tpu.memory_space<vmem>>, %arg8: memref<1x8xf32, #tpu.memory_space<vmem>>) attributes {dimension_semantics = [#tpu.dimension_semantics<parallel>], iteration_bounds = array<i64: 1>, scalar_prefetch = 0 : i64, scratch_operands = 0 : i64, tpu.core_type = #tpu.core_type<tc>, window_params = [{transform_indices = @transform_0, window_bounds = array<i64: 8, 32>}, {pipeline_mode = #tpu.pipeline_mode<synchronous>, transform_indices = @transform_1, window_bounds = array<i64: 32, 64>}, {pipeline_mode = #tpu.pipeline_mode<synchronous>, transform_indices = @transform_2, window_bounds = array<i64: 1, 64>}, {pipeline_mode = #tpu.pipeline_mode<synchronous>, transform_indices = @transform_3, window_bounds = array<i64: 64, 32>}, {pipeline_mode = #tpu.pipeline_mode<synchronous>, transform_indices = @transform_4, window_bounds = array<i64: 1, 32>}, {pipeline_mode = #tpu.pipeline_mode<synchronous>, transform_indices = @transform_5, window_bounds = array<i64: 1, 32>}, {pipeline_mode = #tpu.pipeline_mode<synchronous>, transform_indices = @transform_6, window_bounds = array<i64: 1, 1>}, {transform_indices = @transform_7, window_bounds = array<i64: 1, 8>}]} {
    %c0 = arith.constant 0 : index
    %c0_0 = arith.constant 0 : index
    %0 = vector.load %arg1[%c0, %c0_0] : memref<8x32xf32, #tpu.memory_space<vmem>>, vector<8x32xf32>
    %c0_1 = arith.constant 0 : index
    %c0_2 = arith.constant 0 : index
    %1 = vector.load %arg2[%c0_1, %c0_2] : memref<32x64xf32, #tpu.memory_space<vmem>>, vector<32x64xf32>
    %c0_3 = arith.constant 0 : index
    %c0_4 = arith.constant 0 : index
    %2 = vector.load %arg3[%c0_3, %c0_4] : memref<1x64xf32, #tpu.memory_space<vmem>>, vector<1x64xf32>
    %cst = arith.constant dense<0.000000e+00> : vector<8x64xf32>
    %3 = tpu.matmul %0, %1, %cst {dimension_numbers = #tpu.dot_dimension_numbers<[1], [0], [0], [1], [0, 0, 1, 1], [], []>} : vector<8x32xf32>, vector<32x64xf32>, vector<8x64xf32> -> vector<8x64xf32>
    %4 = vector.broadcast %2 : vector<1x64xf32> to vector<8x64xf32>
    %5 = arith.addf %3, %4 : vector<8x64xf32>
    %cst_5 = arith.constant 0.000000e+00 : f32
    %6 = vector.broadcast %cst_5 : f32 to vector<8x64xf32>
    %7 = arith.maximumf %5, %6 : vector<8x64xf32>
    %c0_6 = arith.constant 0 : index
    %c0_7 = arith.constant 0 : index
    %8 = vector.load %arg4[%c0_6, %c0_7] : memref<64x32xf32, #tpu.memory_space<vmem>>, vector<64x32xf32>
    %c0_8 = arith.constant 0 : index
    %c0_9 = arith.constant 0 : index
    %9 = vector.load %arg5[%c0_8, %c0_9] : memref<1x32xf32, #tpu.memory_space<vmem>>, vector<1x32xf32>
    %cst_10 = arith.constant dense<0.000000e+00> : vector<8x32xf32>
    %10 = tpu.matmul %7, %8, %cst_10 {dimension_numbers = #tpu.dot_dimension_numbers<[1], [0], [0], [1], [0, 0, 1, 1], [], []>} : vector<8x64xf32>, vector<64x32xf32>, vector<8x32xf32> -> vector<8x32xf32>
    %11 = vector.broadcast %9 : vector<1x32xf32> to vector<8x32xf32>
    %12 = arith.addf %10, %11 : vector<8x32xf32>
    %cst_11 = arith.constant 0.000000e+00 : f32
    %13 = vector.broadcast %cst_11 : f32 to vector<8x32xf32>
    %14 = arith.maximumf %12, %13 : vector<8x32xf32>
    %c0_12 = arith.constant 0 : index
    %c0_13 = arith.constant 0 : index
    %15 = vector.load %arg6[%c0_12, %c0_13] : memref<1x32xf32, #tpu.memory_space<vmem>>, vector<1x32xf32>
    %c0_14 = arith.constant 0 : index
    %c0_15 = arith.constant 0 : index
    %16 = vector.load %arg7[%c0_14, %c0_15] : memref<1x1xf32, #tpu.memory_space<vmem>>, vector<1x1xf32>
    %cst_16 = arith.constant dense<0.000000e+00> : vector<1x8xf32>
    %17 = tpu.matmul %15, %14, %cst_16 {dimension_numbers = #tpu.dot_dimension_numbers<[1], [1], [0], [0], [0, 0, 1, 0], [], []>} : vector<1x32xf32>, vector<8x32xf32>, vector<1x8xf32> -> vector<1x8xf32>
    %18 = vector.broadcast %16 : vector<1x1xf32> to vector<1x8xf32>
    %19 = arith.addf %17, %18 : vector<1x8xf32>
    %c0_17 = arith.constant 0 : index
    %c0_18 = arith.constant 0 : index
    %20 = vector.load %arg8[%c0_17, %c0_18] : memref<1x8xf32, #tpu.memory_space<vmem>>, vector<1x8xf32>
    tpu.vector_store %arg8[%c0_17, %c0_18], %19 {strides = array<i32>} : memref<1x8xf32, #tpu.memory_space<vmem>>, vector<1x8xf32>,
    return
  }
  func.func @transform_0(%arg0: i32) -> (i32, i32) {
    %c0_i32 = arith.constant 0 : i32
    %c0_i32_0 = arith.constant 0 : i32
    return %arg0, %c0_i32 : i32, i32
  }
  func.func @transform_1(%arg0: i32) -> (i32, i32) {
    %c0_i32 = arith.constant 0 : i32
    %c0_i32_0 = arith.constant 0 : i32
    %c0_i32_1 = arith.constant 0 : i32
    return %c0_i32, %c0_i32_0 : i32, i32
  }
  func.func @transform_2(%arg0: i32) -> (i32, i32) {
    %c0_i32 = arith.constant 0 : i32
    %c0_i32_0 = arith.constant 0 : i32
    %c0_i32_1 = arith.constant 0 : i32
    return %c0_i32, %c0_i32_0 : i32, i32
  }
  func.func @transform_3(%arg0: i32) -> (i32, i32) {
    %c0_i32 = arith.constant 0 : i32
    %c0_i32_0 = arith.constant 0 : i32
    %c0_i32_1 = arith.constant 0 : i32
    return %c0_i32, %c0_i32_0 : i32, i32
  }
  func.func @transform_4(%arg0: i32) -> (i32, i32) {
    %c0_i32 = arith.constant 0 : i32
    %c0_i32_0 = arith.constant 0 : i32
    %c0_i32_1 = arith.constant 0 : i32
    return %c0_i32, %c0_i32_0 : i32, i32
  }
  func.func @transform_5(%arg0: i32) -> (i32, i32) {
    %c0_i32 = arith.constant 0 : i32
    %c0_i32_0 = arith.constant 0 : i32
    %c0_i32_1 = arith.constant 0 : i32
    return %c0_i32, %c0_i32_0 : i32, i32
  }
  func.func @transform_6(%arg0: i32) -> (i32, i32) {
    %c0_i32 = arith.constant 0 : i32
    %c0_i32_0 = arith.constant 0 : i32
    %c0_i32_1 = arith.constant 0 : i32
    return %c0_i32, %c0_i32_0 : i32, i32
  }
  func.func @transform_7(%arg0: i32) -> (i32, i32) {
    %c0_i32 = arith.constant 0 : i32
    %c0_i32_0 = arith.constant 0 : i32
    return %c0_i32, %arg0 : i32, i32
  }
}

</mosaic_0001>

<llo_original>
// kernel: tpu_custom_call.1
$region0: #{tpu_custom_call.1}
  #allocation0 [shape = 'u32[]', space=smem, size = 0x4, offset = 0x4, fixed_abs, tag = 'smem constant byte address 0x4 - core index']
  #allocation1 [shape = 'u32[144,128]{1,0:T(1,128)}', space=vmem, size = 0x12000, scoped, tag = 'internal scratch']
  #allocation2 [shape = 'f32[1,1]{1,0:T(1,128)S(1)}', space=vmem, size = 0x200, scoped, tag = 'scoped memory for tpu_custom_call.1']
  %s0 = inlined_call_operand.vmem [shape: f32[8,32], index: 0, kind: input, shape index: {}]
  %s1 = inlined_call_operand.vmem [shape: f32[32,64], index: 1, kind: input, shape index: {}]
  %s2 = inlined_call_operand.vmem [shape: f32[1,64], index: 2, kind: input, shape index: {}]
  %s3 = inlined_call_operand.vmem [shape: f32[64,32], index: 3, kind: input, shape index: {}]
  %s4 = inlined_call_operand.vmem [shape: f32[1,32], index: 4, kind: input, shape index: {}]
  %s5 = inlined_call_operand.vmem [shape: f32[1,32], index: 5, kind: input, shape index: {}]
  %s6 = inlined_call_operand.<no memory space> [shape: f32[1,1], index: 6, kind: input, shape index: {}]
  %s7 = inlined_call_operand.hbm [shape: f32[1,8], index: 7, kind: output, shape index: {}]
  %s8 = sld [smem:[#allocation0]]
  $region38: #{tpu_custom_call.1} parent=0
    _
  %s10 = ssub.s32 1, %s8
  %s11 = scalar_select 0, %s10, %s8
  %v12 = vstv %s6
  %13 = vst [vmem:[#allocation2] sm:$0x1] %v12
  $region1: #{tpu_custom_call.1} parent=0
    #allocation3 [shape = 'u8[512]{0}', space=vmem, size = 0x400, scoped, tag = 'output window, operand 0, single buffered']
    #allocation4 [shape = 's32[1]{0}', space=sflag, size = 0x4, scoped, tag = 'scoped memory for tpu_custom_call.1']
    %14 = vsyncpa [#allocation4], 0
    // Predicated region
    $region2: #{tpu_custom_call.1} parent=1 // pred_check
      _
    $region3: #{tpu_custom_call.1} parent=1 // pred_check_branch
      %16 = sbr.rel (0) target = $region5
    $region4: #{tpu_custom_call.1} parent=1 // pred_region
      _
    $region5: #{tpu_custom_call.1} parent=1 // pred_fallthru
      _
    // Predicated region
    $region6: #{tpu_custom_call.1} parent=1 // pred_check
      _
    $region7: #{tpu_custom_call.1} parent=1 // pred_check_branch
      %18 = sbr.rel (0) target = $region9
    $region8: #{tpu_custom_call.1} parent=1 // pred_region
      _
    $region9: #{tpu_custom_call.1} parent=1 // pred_fallthru
      _
    // Predicated region
    $region10: #{tpu_custom_call.1} parent=1 // pred_check
      _
    $region11: #{tpu_custom_call.1} parent=1 // pred_check_branch
      %20 = sbr.rel (0) target = $region13
    $region12: #{tpu_custom_call.1} parent=1 // pred_region
      _
    $region13: #{tpu_custom_call.1} parent=1 // pred_fallthru
      _
    // Predicated region
    $region14: #{tpu_custom_call.1} parent=1 // pred_check
      _
    $region15: #{tpu_custom_call.1} parent=1 // pred_check_branch
      %22 = sbr.rel (0) target = $region17
    $region16: #{tpu_custom_call.1} parent=1 // pred_region
      _
    $region17: #{tpu_custom_call.1} parent=1 // pred_fallthru
      _
    // Predicated region
    $region18: #{tpu_custom_call.1} parent=1 // pred_check
      _
    $region19: #{tpu_custom_call.1} parent=1 // pred_check_branch
      %24 = sbr.rel (0) target = $region21
    $region20: #{tpu_custom_call.1} parent=1 // pred_region
      _
    $region21: #{tpu_custom_call.1} parent=1 // pred_fallthru
      _
    // Predicated region
    $region22: #{tpu_custom_call.1} parent=1 // pred_check
      _
    $region23: #{tpu_custom_call.1} parent=1 // pred_check_branch
      %26 = sbr.rel (0) target = $region25
    $region24: #{tpu_custom_call.1} parent=1 // pred_region
      _
    $region25: #{tpu_custom_call.1} parent=1 // pred_fallthru
      _
    // Predicated region
    $region26: #{tpu_custom_call.1} parent=1 // pred_check
      _
    $region27: #{tpu_custom_call.1} parent=1 // pred_check_branch
      %28 = sbr.rel (0) target = $region29
    $region28: #{tpu_custom_call.1} parent=1 // pred_region
      _
    $region29: #{tpu_custom_call.1} parent=1 // pred_fallthru
      _
    %v29 = vld [vmem:[%s0] sm:$0xff]
    %v30 = vld [vmem:[%s1] sm:$0xff]
    %v31 = vld [vmem:[%s1 + $0x8] sm:$0xff]
    %v32 = vld [vmem:[%s1 + $0x10] sm:$0xff]
    %v33 = vld [vmem:[%s1 + $0x18] sm:$0xff]
    %v34 = vld [vmem:[%s2] sm:$0x1]
    %v36 = vlaneseq
    %v37 = vshrl.u32 %v36, 7
    %v38 = vsub.s32 0, %v37
    %v39 = vrot.slane %v34, %v38
    %vm41 = vcmask 261120
    %v43 = vsel %vm41, %v29, 0
    %45 = vmatprep.subr.mxu0 0.0
    %46 = vmatpush1.msra.mxu0 %v30
    %47 = vmatprep.subr.mxu0 0.0
    %48 = vmatpush1.msra.mxu0 %v31
    %49 = vmatprep.subr.mxu0 0.0
    %50 = vmatpush1.msra.mxu0 %v32
    %51 = vmatprep.subr.mxu0 0.0
    %52 = vmatpush1.msra.mxu0 %v33
    %53 = vmatprep.subr.mxu0 0.0
    %54 = vmatpush1.msra.mxu0 0.0
    %55 = vmatprep.subr.mxu0 0.0
    %56 = vmatpush1.msra.mxu0 0.0
    %57 = vmatprep.subr.mxu0 0.0
    %58 = vmatpush1.msra.mxu0 0.0
    %59 = vmatprep.subr.mxu0 0.0
    %60 = vmatpush1.msra.mxu0 0.0
    %61 = vmatprep.subr.mxu0 0.0
    %62 = vmatpush1.msra.mxu0 0.0
    %63 = vmatprep.subr.mxu0 0.0
    %64 = vmatpush1.msra.mxu0 0.0
    %65 = vmatprep.subr.mxu0 0.0
    %66 = vmatpush1.msra.mxu0 0.0
    %67 = vmatprep.subr.mxu0 0.0
    %68 = vmatpush1.msra.mxu0 0.0
    %69 = vmatprep.subr.mxu0 0.0
    %70 = vmatpush1.msra.mxu0 0.0
    %71 = vmatprep.subr.mxu0 0.0
    %72 = vmatpush1.msra.mxu0 0.0
    %73 = vmatprep.subr.mxu0 0.0
    %74 = vmatpush1.msra.mxu0 0.0
    %75 = vmatprep.subr.mxu0 0.0
    %76 = vmatpush1.msra.mxu0 0.0
    %77 = vmatprep.subr.mxu0 0.0
    %78 = vmatpush1.msra.mxu0 0.0
    %79 = vmatprep.subr.mxu0 0.0
    %80 = vmatpush1.msra.mxu0 0.0
    %81 = vmatprep.subr.mxu0 0.0
    %82 = vmatpush1.msra.mxu0 0.0
    %83 = vmatprep.subr.mxu0 0.0
    %84 = vmatpush1.msra.mxu0 0.0
    %85 = vmatprep.subr.mxu0 0.0
    %86 = vmatpush1.msra.mxu0 0.0
    %87 = vmatprep.subr.mxu0 0.0
    %88 = vmatpush1.msra.mxu0 0.0
    %89 = vmatprep.subr.mxu0 0.0
    %90 = vmatpush1.msra.mxu0 0.0
    %91 = vmatprep.subr.mxu0 0.0
    %92 = vmatpush1.msra.mxu0 0.0
    %93 = vmatprep.subr.mxu0 0.0
    %94 = vmatpush1.msra.mxu0 0.0
    %95 = vmatprep.subr.mxu0 0.0
    %96 = vmatpush1.msra.mxu0 0.0
    %97 = vmatprep.subr.mxu0 0.0
    %98 = vmatpush1.msra.mxu0 0.0
    %99 = vmatprep.subr.mxu0 0.0
    %100 = vmatpush1.msra.mxu0 0.0
    %101 = vmatprep.subr.mxu0 0.0
    %102 = vmatpush1.msra.mxu0 0.0
    %103 = vmatprep.subr.mxu0 0.0
    %104 = vmatpush1.msra.mxu0 0.0
    %105 = vmatprep.subr.mxu0 0.0
    %106 = vmatpush1.msra.mxu0 0.0
    %107 = vmatprep.subr.mxu0 0.0
    %108 = vmatpush1.msra.mxu0 0.0
    %109 = vmatprep.mubr.f32.mxu0 0.0
    %110 = vmatmul.mubr.f32.gmra.mrb[0].mxu0 %v43
    %v111 = vpop.f32.mrb[0].mxu0
    %v112 = vadd.f32 %v39, %v111
    %v113 = vpop.f32.mrb[0].mxu0
    %114 = vdwg.mxu0
    %v115 = vmax.f32 %v112, 0.0
    %v116 = vld [vmem:[%s3] sm:$0xff]
    %v117 = vld [vmem:[%s3 + $0x8] sm:$0xff]
    %v118 = vld [vmem:[%s3 + $0x10] sm:$0xff]
    %v119 = vld [vmem:[%s3 + $0x18] sm:$0xff]
    %v120 = vld [vmem:[%s3 + $0x20] sm:$0xff]
    %v121 = vld [vmem:[%s3 + $0x28] sm:$0xff]
    %v122 = vld [vmem:[%s3 + $0x30] sm:$0xff]
    %v123 = vld [vmem:[%s3 + $0x38] sm:$0xff]
    %v124 = vld [vmem:[%s4] sm:$0x1]
    %v126 = vlaneseq
    %v127 = vshrl.u32 %v126, 7
    %v128 = vsub.s32 0, %v127
    %v129 = vrot.slane %v124, %v128
    %vm131 = vcmask 523264
    %v133 = vsel %vm131, %v115, 0
    %135 = vmatprep.subr.mxu0 0.0
    %136 = vmatpush1.msra.mxu0 %v116
    %137 = vmatprep.subr.mxu0 0.0
    %138 = vmatpush1.msra.mxu0 %v117
    %139 = vmatprep.subr.mxu0 0.0
    %140 = vmatpush1.msra.mxu0 %v118
    %141 = vmatprep.subr.mxu0 0.0
    %142 = vmatpush1.msra.mxu0 %v119
    %143 = vmatprep.subr.mxu0 0.0
    %144 = vmatpush1.msra.mxu0 %v120
    %145 = vmatprep.subr.mxu0 0.0
    %146 = vmatpush1.msra.mxu0 %v121
    %147 = vmatprep.subr.mxu0 0.0
    %148 = vmatpush1.msra.mxu0 %v122
    %149 = vmatprep.subr.mxu0 0.0
    %150 = vmatpush1.msra.mxu0 %v123
    %151 = vmatprep.subr.mxu0 0.0
    %152 = vmatpush1.msra.mxu0 0.0
    %153 = vmatprep.subr.mxu0 0.0
    %154 = vmatpush1.msra.mxu0 0.0
    %155 = vmatprep.subr.mxu0 0.0
    %156 = vmatpush1.msra.mxu0 0.0
    %157 = vmatprep.subr.mxu0 0.0
    %158 = vmatpush1.msra.mxu0 0.0
    %159 = vmatprep.subr.mxu0 0.0
    %160 = vmatpush1.msra.mxu0 0.0
    %161 = vmatprep.subr.mxu0 0.0
    %162 = vmatpush1.msra.mxu0 0.0
    %163 = vmatprep.subr.mxu0 0.0
    %164 = vmatpush1.msra.mxu0 0.0
    %165 = vmatprep.subr.mxu0 0.0
    %166 = vmatpush1.msra.mxu0 0.0
    %167 = vmatprep.subr.mxu0 0.0
    %168 = vmatpush1.msra.mxu0 0.0
    %169 = vmatprep.subr.mxu0 0.0
    %170 = vmatpush1.msra.mxu0 0.0
    %171 = vmatprep.subr.mxu0 0.0
    %172 = vmatpush1.msra.mxu0 0.0
    %173 = vmatprep.subr.mxu0 0.0
    %174 = vmatpush1.msra.mxu0 0.0
    %175 = vmatprep.subr.mxu0 0.0
    %176 = vmatpush1.msra.mxu0 0.0
    %177 = vmatprep.subr.mxu0 0.0
    %178 = vmatpush1.msra.mxu0 0.0
    %179 = vmatprep.subr.mxu0 0.0
    %180 = vmatpush1.msra.mxu0 0.0
    %181 = vmatprep.subr.mxu0 0.0
    %182 = vmatpush1.msra.mxu0 0.0
    %183 = vmatprep.subr.mxu0 0.0
    %184 = vmatpush1.msra.mxu0 0.0
    %185 = vmatprep.subr.mxu0 0.0
    %186 = vmatpush1.msra.mxu0 0.0
    %187 = vmatprep.subr.mxu0 0.0
    %188 = vmatpush1.msra.mxu0 0.0
    %189 = vmatprep.subr.mxu0 0.0
    %190 = vmatpush1.msra.mxu0 0.0
    %191 = vmatprep.subr.mxu0 0.0
    %192 = vmatpush1.msra.mxu0 0.0
    %193 = vmatprep.subr.mxu0 0.0
    %194 = vmatpush1.msra.mxu0 0.0
    %195 = vmatprep.subr.mxu0 0.0
    %196 = vmatpush1.msra.mxu0 0.0
    %197 = vmatprep.subr.mxu0 0.0
    %198 = vmatpush1.msra.mxu0 0.0
    %199 = vmatprep.mubr.f32.mxu0 0.0
    %200 = vmatmul.mubr.f32.gmra.mrb[0].mxu0 %v133
    %v201 = vpop.f32.mrb[0].mxu0
    %v202 = vadd.f32 %v129, %v201
    %v203 = vpop.f32.mrb[0].mxu0
    %204 = vdwg.mxu0
    %v205 = vmax.f32 %v202, 0.0
    %v206 = vld [vmem:[%s5] sm:$0x1]
    %v207 = vld [vmem:[#allocation2] sm:$0x1]
    %209 = vset.pattern.permute.xlu0 0
    %210 = vperm.xlu0 %209, %v207
    %v211 = vpop.permute.xlu0 %210
    %v213 = vlaneseq
    %v214 = vshrl.u32 %v213, 7
    %v215 = vsub.s32 0, %v214
    %v216 = vrot.slane %v211, %v215
    %v218 = vsel %vm41, %v206, 0
    %v221 = vsel %vm41, %v205, 0
    %223 = vmatprep.subr.mxu0 0.0
    %224 = vmatpush1.xpose.msra.mxu0 %v221
    %225 = vmatprep.subr.mxu0 0.0
    %226 = vmatpush1.xpose.msra.mxu0 0.0
    %227 = vmatprep.subr.mxu0 0.0
    %228 = vmatpush1.xpose.msra.mxu0 0.0
    %229 = vmatprep.subr.mxu0 0.0
    %230 = vmatpush1.xpose.msra.mxu0 0.0
    %231 = vmatprep.subr.mxu0 0.0
    %232 = vmatpush1.xpose.msra.mxu0 0.0
    %233 = vmatprep.subr.mxu0 0.0
    %234 = vmatpush1.xpose.msra.mxu0 0.0
    %235 = vmatprep.subr.mxu0 0.0
    %236 = vmatpush1.xpose.msra.mxu0 0.0
    %237 = vmatprep.subr.mxu0 0.0
    %238 = vmatpush1.xpose.msra.mxu0 0.0
    %239 = vmatprep.subr.mxu0 0.0
    %240 = vmatpush1.xpose.msra.mxu0 0.0
    %241 = vmatprep.subr.mxu0 0.0
    %242 = vmatpush1.xpose.msra.mxu0 0.0
    %243 = vmatprep.subr.mxu0 0.0
    %244 = vmatpush1.xpose.msra.mxu0 0.0
    %245 = vmatprep.subr.mxu0 0.0
    %246 = vmatpush1.xpose.msra.mxu0 0.0
    %247 = vmatprep.subr.mxu0 0.0
    %248 = vmatpush1.xpose.msra.mxu0 0.0
    %249 = vmatprep.subr.mxu0 0.0
    %250 = vmatpush1.xpose.msra.mxu0 0.0
    %251 = vmatprep.subr.mxu0 0.0
    %252 = vmatpush1.xpose.msra.mxu0 0.0
    %253 = vmatprep.subr.mxu0 0.0
    %254 = vmatpush1.xpose.msra.mxu0 0.0
    %255 = vmatprep.subr.mxu0 0.0
    %256 = vmatpush1.xpose.msra.mxu0 0.0
    %257 = vmatprep.subr.mxu0 0.0
    %258 = vmatpush1.xpose.msra.mxu0 0.0
    %259 = vmatprep.subr.mxu0 0.0
    %260 = vmatpush1.xpose.msra.mxu0 0.0
    %261 = vmatprep.subr.mxu0 0.0
    %262 = vmatpush1.xpose.msra.mxu0 0.0
    %263 = vmatprep.subr.mxu0 0.0
    %264 = vmatpush1.xpose.msra.mxu0 0.0
    %265 = vmatprep.subr.mxu0 0.0
    %266 = vmatpush1.xpose.msra.mxu0 0.0
    %267 = vmatprep.subr.mxu0 0.0
    %268 = vmatpush1.xpose.msra.mxu0 0.0
    %269 = vmatprep.subr.mxu0 0.0
    %270 = vmatpush1.xpose.msra.mxu0 0.0
    %271 = vmatprep.subr.mxu0 0.0
    %272 = vmatpush1.xpose.msra.mxu0 0.0
    %273 = vmatprep.subr.mxu0 0.0
    %274 = vmatpush1.xpose.msra.mxu0 0.0
    %275 = vmatprep.subr.mxu0 0.0
    %276 = vmatpush1.xpose.msra.mxu0 0.0
    %277 = vmatprep.subr.mxu0 0.0
    %278 = vmatpush1.xpose.msra.mxu0 0.0
    %279 = vmatprep.subr.mxu0 0.0
    %280 = vmatpush1.xpose.msra.mxu0 0.0
    %281 = vmatprep.subr.mxu0 0.0
    %282 = vmatpush1.xpose.msra.mxu0 0.0
    %283 = vmatprep.subr.mxu0 0.0
    %284 = vmatpush1.xpose.msra.mxu0 0.0
    %285 = vmatprep.subr.mxu0 0.0
    %286 = vmatpush1.xpose.msra.mxu0 0.0
    %287 = vmatprep.mubr.f32.mxu0 0.0
    %288 = vmatmul.mubr.f32.gmra.mrb[0].mxu0 %v218
    %v289 = vpop.f32.mrb[0].mxu0
    %v290 = vadd.f32 %v216, %v289
    %v291 = vpop.f32.mrb[0].mxu0
    %292 = vdwg.mxu0
    %vm293 = vcmask 57344
    %294 = vst.msk [vmem:[#allocation3] sm:$0x1] %vm293, %v290
    // Predicated region
    $region30: #{tpu_custom_call.1} parent=1 // pred_check
      _
    $region31: #{tpu_custom_call.1} parent=1 // pred_check_branch
      %296 = sbr.rel (0) target = $region33
    $region32: #{tpu_custom_call.1} parent=1 // pred_region
      %s298 = ssub.s32 16, 16
      %299 = vsyncadd [#allocation4], %s298
      %s301 = sshll.u32 [#allocation3], 4
      %s302 = int_to_ptr.vmem [resolvable:$true] %s301
      %304 = dma.vmem_to_hbm [thread:$0]  %s302, 16, %s7, [#allocation4]
    $region33: #{tpu_custom_call.1} parent=1 // pred_fallthru
      _
    // Predicated region
    $region34: #{tpu_custom_call.1} parent=1 // pred_check
      _
    $region35: #{tpu_custom_call.1} parent=1 // pred_check_branch
      %306 = sbr.rel (0) target = $region37
    $region36: #{tpu_custom_call.1} parent=1 // pred_region
      %307 = dma.done [#allocation4], 16
    $region37: #{tpu_custom_call.1} parent=1 // pred_fallthru
      _
    %308 = vsyncpa [#allocation4], 1

</llo_original>
